<compile_context>
chip_gen: v6e
topology: v6e:2x2x1
jax: 0.10.0
libtpu: 0.0.40
codegen_flags: <defaults>
</compile_context>

<pallas_src>
import functools

import jax
import jax.numpy as jnp
from jax.experimental import pallas as pl
from jax.experimental.pallas import tpu as pltpu

LANES = 128          # lane width (last dim of the 2-D view)
CHUNK_R = 256        # rows folded per inner step: 32 f32 vregs -> no spills
BLOCK_R_MAX = 4096   # rows per grid block: 4096*128*4 B = 2 MiB per buffer


def _round_up(x, m):
    return ((x + m - 1) // m) * m


def _make_reduce_kernel(block_r, nblocks, bpc, nfull, nrem, needs_mask):
    """Builds a reduction kernel specialized (closure) for one tensor shape.

    block_r:   rows per grid block (multiple of CHUNK_R)
    nblocks:   number of valid row-blocks in the input
    bpc:       blocks per core (second grid axis extent)
    nfull:     number of fully-valid 128-wide rows (= n // 128)
    nrem:      valid elements in the partial row (= n % 128)
    needs_mask: whether the globally-last block contains padded / OOB data
    """
    n_chunks = block_r // CHUNK_R

    def kernel(x_ref, sum_ref, max_ref, min_ref, acc_s, acc_mx, acc_mn):
        c = pl.program_id(0)          # core / parallel axis
        i = pl.program_id(1)          # per-core block index (reduction axis)
        g = c * bpc + i               # global block index

        @pl.when(i == 0)
        def _init():
            acc_s[...] = jnp.zeros_like(acc_s)
            acc_mx[...] = jnp.full_like(acc_mx, -jnp.inf)
            acc_mn[...] = jnp.full_like(acc_mn, jnp.inf)

        def accumulate(xs, xmx, xmn):
            # Fold (CHUNK_R, 128) -> (8, 128) with VPU elementwise ops only.
            acc_s[...] = acc_s[...] + xs.reshape(-1, 8, LANES).sum(axis=0)
            acc_mx[...] = jnp.maximum(
                acc_mx[...], xmx.reshape(-1, 8, LANES).max(axis=0))
            acc_mn[...] = jnp.minimum(
                acc_mn[...], xmn.reshape(-1, 8, LANES).min(axis=0))

        def plain_block():
            @pl.loop(0, n_chunks)
            def _(j):
                off = pl.multiple_of(j * CHUNK_R, CHUNK_R)
                xc = x_ref[pl.ds(off, CHUNK_R), :].astype(jnp.float32)
                accumulate(xc, xc, xc)

        if needs_mask:
            # Steady state: no masking at all.
            @pl.when(g < nblocks - 1)
            def _bulk():
                plain_block()

            # Globally-last block: mask padded / out-of-bounds elements.
            @pl.when(g == nblocks - 1)
            def _tail():
                row0 = (nblocks - 1) * block_r  # static

                @pl.loop(0, n_chunks)
                def _(j):
                    off = pl.multiple_of(j * CHUNK_R, CHUNK_R)
                    xc = x_ref[pl.ds(off, CHUNK_R), :].astype(jnp.float32)
                    rows_g = (jax.lax.broadcasted_iota(jnp.int32, xc.shape, 0)
                              + (row0 + off))
                    cols = jax.lax.broadcasted_iota(jnp.int32, xc.shape, 1)
                    # Row-level compare (no flat-index multiply -> no int32
                    # overflow for huge tensors).
                    valid = (rows_g < nfull) | ((rows_g == nfull) & (cols < nrem))
                    accumulate(jnp.where(valid, xc, jnp.float32(0.0)),
                               jnp.where(valid, xc, jnp.float32(-jnp.inf)),
                               jnp.where(valid, xc, jnp.float32(jnp.inf)))
        else:
            @pl.when(g < nblocks)
            def _bulk():
                plain_block()

        # One cross-lane/sublane reduce per core, at its last step only.
        @pl.when(i == bpc - 1)
        def _finalize():
            sum_ref[...] = jnp.sum(acc_s[...], keepdims=True).reshape(1, 1, 1)
            max_ref[...] = jnp.max(acc_mx[...], keepdims=True).reshape(1, 1, 1)
            min_ref[...] = jnp.min(acc_mn[...], keepdims=True).reshape(1, 1, 1)

    return kernel


@jax.jit
def _tensor_stats(x):
    """Returns (sum, mean, max, min) of an arbitrary-shaped tensor via Pallas."""
    if not jnp.issubdtype(x.dtype, jnp.floating):
        x = x.astype(jnp.float32)     # torch .mean() needs float anyway
    n = int(x.size)
    flat = x.reshape(-1)              # free reshape, native dtype (cast in-kernel)

    rows = pl.cdiv(n, LANES)
    if n % LANES != 0:
        # Only ever pads < 128 elements (sub-row raggedness).
        flat = jnp.pad(flat, (0, rows * LANES - n))
    x2d = flat.reshape(rows, LANES)

    block_r = min(BLOCK_R_MAX, _round_up(rows, CHUNK_R))
    nblocks = pl.cdiv(rows, block_r)
    num_cores = 2 if nblocks >= 2 else 1   # shard reduction across TCs (v7x)
    bpc = pl.cdiv(nblocks, num_cores)
    nfull, nrem = n // LANES, n % LANES
    needs_mask = (nblocks * block_r * LANES) != n

    kernel = _make_reduce_kernel(block_r, nblocks, bpc, nfull, nrem, needs_mask)

    if nblocks == num_cores * bpc:
        x_index = lambda c, i: (c * bpc + i, 0)
    else:
        # Clamp redundant trailing blocks in-bounds; their compute is skipped.
        x_index = lambda c, i: (jnp.minimum(c * bpc + i, nblocks - 1), 0)

    out_sds = jax.ShapeDtypeStruct((num_cores, 1, 1), jnp.float32)
    out_spec = pl.BlockSpec((1, 1, 1), lambda c, i: (c, 0, 0))

    sums, maxs, mins = pl.pallas_call(
        kernel,
        out_shape=(out_sds, out_sds, out_sds),
        grid=(num_cores, bpc),
        in_specs=[pl.BlockSpec((block_r, LANES), x_index)],
        out_specs=(out_spec, out_spec, out_spec),
        scratch_shapes=[pltpu.VMEM((8, LANES), jnp.float32) for _ in range(3)],
        compiler_params=pltpu.CompilerParams(
            dimension_semantics=("parallel", "arbitrary")),
    )(x2d)

    s = jnp.sum(sums)                  # combine per-core partials
    mx = jnp.max(maxs)
    mn = jnp.min(mins)
    return s, s / jnp.float32(n), mx, mn


def pt_module_forward(inputs):
    """Mirrors PtModule.forward: list of tensors -> list of dicts of floats."""
    # Launch all per-tensor kernels first, then sync/transfer once at the end.
    stats = [_tensor_stats(t) for t in inputs]
    stats = jax.block_until_ready(stats)
    host = jax.device_get(stats)
    return [
        {"sum": float(s), "mean": float(m), "max": float(mx), "min": float(mn)}
        for (s, m, mx, mn) in host
    ]


if __name__ == "__main__":
    key = jax.random.PRNGKey(0)
    k1, k2, k3, k4 = jax.random.split(key, 4)

    # Small deterministic example inputs (a list of tensors, as the module expects).
    inputs = [
        jax.random.normal(k1, (2, 4, 16, 16), dtype=jnp.float32),  # NCHW-like
        jax.random.normal(k2, (8, 32), dtype=jnp.float32),
        jax.random.normal(k3, (3, 5, 7), dtype=jnp.float32),       # 105 elems -> ragged mask
        jax.random.normal(k4, (512, 1030), dtype=jnp.float32),     # multi-block + 2-core path
    ]

    results = pt_module_forward(inputs)

    # Verify against plain-JAX reference.
    ok = True
    for t, r in zip(inputs, results):
        t32 = t.astype(jnp.float32)
        ref = {
            "sum": float(jnp.sum(t32)),
            "mean": float(jnp.mean(t32)),
            "max": float(jnp.max(t32)),
            "min": float(jnp.min(t32)),
        }
        for kname in ("sum", "mean", "max", "min"):
            if abs(ref[kname] - r[kname]) > 1e-3 * max(1.0, abs(ref[kname])):
                ok = False

    if ok:
        print("KERNEL_OK")
    else:
        print("KERNEL_MISMATCH", results)
</pallas_src>

<mosaic_0001>
module attributes {stable_mosaic.version = 11 : i64} {
  func.func @kernel(%arg0: i32, %arg1: i32, %arg2: memref<256x128xf32, #tpu.memory_space<vmem>>, %arg3: memref<1x1x1xf32, #tpu.memory_space<vmem>>, %arg4: memref<1x1x1xf32, #tpu.memory_space<vmem>>, %arg5: memref<1x1x1xf32, #tpu.memory_space<vmem>>, %arg6: memref<8x128xf32, #tpu.memory_space<vmem>>, %arg7: memref<8x128xf32, #tpu.memory_space<vmem>>, %arg8: memref<8x128xf32, #tpu.memory_space<vmem>>) attributes {dimension_semantics = [#tpu.dimension_semantics<parallel>, #tpu.dimension_semantics<arbitrary>], iteration_bounds = array<i64: 1, 1>, scalar_prefetch = 0 : i64, scratch_operands = 3 : i64, tpu.core_type = #tpu.core_type<tc>, window_params = [{transform_indices = @transform_0, window_bounds = array<i64: 256, 128>}, {transform_indices = @transform_1, window_bounds = array<i64: 1, 1, 1>}, {transform_indices = @transform_2, window_bounds = array<i64: 1, 1, 1>}, {transform_indices = @transform_3, window_bounds = array<i64: 1, 1, 1>}]} {
    %c1_i32 = arith.constant 1 : i32
    %0 = arith.muli %arg0, %c1_i32 : i32
    %1 = arith.addi %0, %arg1 : i32
    %c0_i32 = arith.constant 0 : i32
    %2 = arith.cmpi eq, %arg1, %c0_i32 : i32
    %3 = arith.extui %2 : i1 to i32
    %c0_i32_0 = arith.constant 0 : i32
    %4 = arith.cmpi ne, %3, %c0_i32_0 : i32
    scf.if %4 {
      %cst = arith.constant 0.000000e+00 : f32
      %14 = vector.broadcast %cst : f32 to vector<8x128xf32>
      %c0 = arith.constant 0 : index
      %c0_7 = arith.constant 0 : index
      %15 = vector.load %arg6[%c0, %c0_7] : memref<8x128xf32, #tpu.memory_space<vmem>>, vector<8x128xf32>
      tpu.vector_store %arg6[%c0, %c0_7], %14 {strides = array<i32>} : memref<8x128xf32, #tpu.memory_space<vmem>>, vector<8x128xf32>,
      %cst_8 = arith.constant 0xFF800000 : f32
      %16 = vector.broadcast %cst_8 : f32 to vector<8x128xf32>
      %c0_9 = arith.constant 0 : index
      %c0_10 = arith.constant 0 : index
      %17 = vector.load %arg7[%c0_9, %c0_10] : memref<8x128xf32, #tpu.memory_space<vmem>>, vector<8x128xf32>
      tpu.vector_store %arg7[%c0_9, %c0_10], %16 {strides = array<i32>} : memref<8x128xf32, #tpu.memory_space<vmem>>, vector<8x128xf32>,
      %cst_11 = arith.constant 0x7F800000 : f32
      %18 = vector.broadcast %cst_11 : f32 to vector<8x128xf32>
      %c0_12 = arith.constant 0 : index
      %c0_13 = arith.constant 0 : index
      %19 = vector.load %arg8[%c0_12, %c0_13] : memref<8x128xf32, #tpu.memory_space<vmem>>, vector<8x128xf32>
      tpu.vector_store %arg8[%c0_12, %c0_13], %18 {strides = array<i32>} : memref<8x128xf32, #tpu.memory_space<vmem>>, vector<8x128xf32>,
    } else {
    }
    %c0_i32_1 = arith.constant 0 : i32
    %5 = arith.cmpi slt, %1, %c0_i32_1 : i32
    %6 = arith.extui %5 : i1 to i32
    %c0_i32_2 = arith.constant 0 : i32
    %7 = arith.cmpi ne, %6, %c0_i32_2 : i32
    scf.if %7 {
      %c0_i32_7 = arith.constant 0 : i32
      %c1_i32_8 = arith.constant 1 : i32
      %14 = arith.muli %c0_i32_7, %c1_i32_8 : i32
      %c0_i32_9 = arith.constant 0 : i32
      %15 = arith.addi %c0_i32_9, %14 : i32
      %c256_i32 = arith.constant 256 : i32
      %16 = arith.muli %15, %c256_i32 : i32
      %17 = tpu.assume_multiple %16, 256 : i32
      %18 = arith.index_cast %17 : i32 to index
      %c0 = arith.constant 0 : index
      %19 = vector.load %arg2[%18, %c0] : memref<256x128xf32, #tpu.memory_space<vmem>>, vector<256x128xf32>
      %c0_10 = arith.constant 0 : index
      %c0_11 = arith.constant 0 : index
      %20 = vector.load %arg6[%c0_10, %c0_11] : memref<8x128xf32, #tpu.memory_space<vmem>>, vector<8x128xf32>
      %21 = vector.shape_cast %19 : vector<256x128xf32> to vector<32x8x128xf32>
      %cst = arith.constant dense<0.000000e+00> : vector<8x128xf32>
      %22 = vector.multi_reduction <add>, %21, %cst [0] : vector<32x8x128xf32> to vector<8x128xf32>
      %23 = arith.addf %20, %22 : vector<8x128xf32>
      %c0_12 = arith.constant 0 : index
      %c0_13 = arith.constant 0 : index
      %24 = vector.load %arg6[%c0_12, %c0_13] : memref<8x128xf32, #tpu.memory_space<vmem>>, vector<8x128xf32>
      tpu.vector_store %arg6[%c0_12, %c0_13], %23 {strides = array<i32>} : memref<8x128xf32, #tpu.memory_space<vmem>>, vector<8x128xf32>,
      %c0_14 = arith.constant 0 : index
      %c0_15 = arith.constant 0 : index
      %25 = vector.load %arg7[%c0_14, %c0_15] : memref<8x128xf32, #tpu.memory_space<vmem>>, vector<8x128xf32>
      %26 = vector.shape_cast %19 : vector<256x128xf32> to vector<32x8x128xf32>
      %cst_16 = arith.constant dense<0xFF800000> : vector<8x128xf32>
      %27 = vector.multi_reduction <maximumf>, %26, %cst_16 [0] : vector<32x8x128xf32> to vector<8x128xf32>
      %28 = arith.maximumf %25, %27 : vector<8x128xf32>
      %c0_17 = arith.constant 0 : index
      %c0_18 = arith.constant 0 : index
      %29 = vector.load %arg7[%c0_17, %c0_18] : memref<8x128xf32, #tpu.memory_space<vmem>>, vector<8x128xf32>
      tpu.vector_store %arg7[%c0_17, %c0_18], %28 {strides = array<i32>} : memref<8x128xf32, #tpu.memory_space<vmem>>, vector<8x128xf32>,
      %c0_19 = arith.constant 0 : index
      %c0_20 = arith.constant 0 : index
      %30 = vector.load %arg8[%c0_19, %c0_20] : memref<8x128xf32, #tpu.memory_space<vmem>>, vector<8x128xf32>
      %31 = vector.shape_cast %19 : vector<256x128xf32> to vector<32x8x128xf32>
      %cst_21 = arith.constant dense<0x7F800000> : vector<8x128xf32>
      %32 = vector.multi_reduction <minimumf>, %31, %cst_21 [0] : vector<32x8x128xf32> to vector<8x128xf32>
      %33 = arith.minimumf %30, %32 : vector<8x128xf32>
      %c0_22 = arith.constant 0 : index
      %c0_23 = arith.constant 0 : index
      %34 = vector.load %arg8[%c0_22, %c0_23] : memref<8x128xf32, #tpu.memory_space<vmem>>, vector<8x128xf32>
      tpu.vector_store %arg8[%c0_22, %c0_23], %33 {strides = array<i32>} : memref<8x128xf32, #tpu.memory_space<vmem>>, vector<8x128xf32>,
      %c1_i32_24 = arith.constant 1 : i32
    } else {
    }
    %c0_i32_3 = arith.constant 0 : i32
    %8 = arith.cmpi eq, %1, %c0_i32_3 : i32
    %9 = arith.extui %8 : i1 to i32
    %c0_i32_4 = arith.constant 0 : i32
    %10 = arith.cmpi ne, %9, %c0_i32_4 : i32
    scf.if %10 {
      %c0_i32_7 = arith.constant 0 : i32
      %c1_i32_8 = arith.constant 1 : i32
      %14 = arith.muli %c0_i32_7, %c1_i32_8 : i32
      %c0_i32_9 = arith.constant 0 : i32
      %15 = arith.addi %c0_i32_9, %14 : i32
      %c256_i32 = arith.constant 256 : i32
      %16 = arith.muli %15, %c256_i32 : i32
      %17 = tpu.assume_multiple %16, 256 : i32
      %18 = arith.index_cast %17 : i32 to index
      %c0 = arith.constant 0 : index
      %19 = vector.load %arg2[%18, %c0] : memref<256x128xf32, #tpu.memory_space<vmem>>, vector<256x128xf32>
      %20 = tpu.iota {dimensions = array<i32: 0>} : vector<256x128xi32>
      %c0_i32_10 = arith.constant 0 : i32
      %21 = arith.addi %c0_i32_10, %17 : i32
      %22 = vector.broadcast %21 : i32 to vector<256x128xi32>
      %23 = arith.addi %20, %22 : vector<256x128xi32>
      %24 = tpu.iota {dimensions = array<i32: 1>} : vector<256x128xi32>
      %c16_i32 = arith.constant 16 : i32
      %25 = vector.broadcast %c16_i32 : i32 to vector<256x128xi32>
      %26 = arith.cmpi slt, %23, %25 : vector<256x128xi32>
      %c16_i32_11 = arith.constant 16 : i32
      %27 = vector.broadcast %c16_i32_11 : i32 to vector<256x128xi32>
      %28 = arith.cmpi eq, %23, %27 : vector<256x128xi32>
      %c0_i32_12 = arith.constant 0 : i32
      %29 = vector.broadcast %c0_i32_12 : i32 to vector<256x128xi32>
      %30 = arith.cmpi slt, %24, %29 : vector<256x128xi32>
      %31 = arith.andi %28, %30 : vector<256x128xi1>
      %32 = arith.ori %26, %31 : vector<256x128xi1>
      %cst = arith.constant 0.000000e+00 : f32
      %33 = vector.broadcast %cst : f32 to vector<256x128xf32>
      %34 = arith.select %32, %19, %33 : vector<256x128xi1>, vector<256x128xf32>
      %cst_13 = arith.constant 0xFF800000 : f32
      %35 = vector.broadcast %cst_13 : f32 to vector<256x128xf32>
      %36 = arith.select %32, %19, %35 : vector<256x128xi1>, vector<256x128xf32>
      %cst_14 = arith.constant 0x7F800000 : f32
      %37 = vector.broadcast %cst_14 : f32 to vector<256x128xf32>
      %38 = arith.select %32, %19, %37 : vector<256x128xi1>, vector<256x128xf32>
      %c0_15 = arith.constant 0 : index
      %c0_16 = arith.constant 0 : index
      %39 = vector.load %arg6[%c0_15, %c0_16] : memref<8x128xf32, #tpu.memory_space<vmem>>, vector<8x128xf32>
      %40 = vector.shape_cast %34 : vector<256x128xf32> to vector<32x8x128xf32>
      %cst_17 = arith.constant dense<0.000000e+00> : vector<8x128xf32>
      %41 = vector.multi_reduction <add>, %40, %cst_17 [0] : vector<32x8x128xf32> to vector<8x128xf32>
      %42 = arith.addf %39, %41 : vector<8x128xf32>
      %c0_18 = arith.constant 0 : index
      %c0_19 = arith.constant 0 : index
      %43 = vector.load %arg6[%c0_18, %c0_19] : memref<8x128xf32, #tpu.memory_space<vmem>>, vector<8x128xf32>
      tpu.vector_store %arg6[%c0_18, %c0_19], %42 {strides = array<i32>} : memref<8x128xf32, #tpu.memory_space<vmem>>, vector<8x128xf32>,
      %c0_20 = arith.constant 0 : index
      %c0_21 = arith.constant 0 : index
      %44 = vector.load %arg7[%c0_20, %c0_21] : memref<8x128xf32, #tpu.memory_space<vmem>>, vector<8x128xf32>
      %45 = vector.shape_cast %36 : vector<256x128xf32> to vector<32x8x128xf32>
      %cst_22 = arith.constant dense<0xFF800000> : vector<8x128xf32>
      %46 = vector.multi_reduction <maximumf>, %45, %cst_22 [0] : vector<32x8x128xf32> to vector<8x128xf32>
      %47 = arith.maximumf %44, %46 : vector<8x128xf32>
      %c0_23 = arith.constant 0 : index
      %c0_24 = arith.constant 0 : index
      %48 = vector.load %arg7[%c0_23, %c0_24] : memref<8x128xf32, #tpu.memory_space<vmem>>, vector<8x128xf32>
      tpu.vector_store %arg7[%c0_23, %c0_24], %47 {strides = array<i32>} : memref<8x128xf32, #tpu.memory_space<vmem>>, vector<8x128xf32>,
      %c0_25 = arith.constant 0 : index
      %c0_26 = arith.constant 0 : index
      %49 = vector.load %arg8[%c0_25, %c0_26] : memref<8x128xf32, #tpu.memory_space<vmem>>, vector<8x128xf32>
      %50 = vector.shape_cast %38 : vector<256x128xf32> to vector<32x8x128xf32>
      %cst_27 = arith.constant dense<0x7F800000> : vector<8x128xf32>
      %51 = vector.multi_reduction <minimumf>, %50, %cst_27 [0] : vector<32x8x128xf32> to vector<8x128xf32>
      %52 = arith.minimumf %49, %51 : vector<8x128xf32>
      %c0_28 = arith.constant 0 : index
      %c0_29 = arith.constant 0 : index
      %53 = vector.load %arg8[%c0_28, %c0_29] : memref<8x128xf32, #tpu.memory_space<vmem>>, vector<8x128xf32>
      tpu.vector_store %arg8[%c0_28, %c0_29], %52 {strides = array<i32>} : memref<8x128xf32, #tpu.memory_space<vmem>>, vector<8x128xf32>,
      %c1_i32_30 = arith.constant 1 : i32
    } else {
    }
    %c0_i32_5 = arith.constant 0 : i32
    %11 = arith.cmpi eq, %arg1, %c0_i32_5 : i32
    %12 = arith.extui %11 : i1 to i32
    %c0_i32_6 = arith.constant 0 : i32
    %13 = arith.cmpi ne, %12, %c0_i32_6 : i32
    scf.if %13 {
      %c0 = arith.constant 0 : index
      %c0_7 = arith.constant 0 : index
      %14 = vector.load %arg6[%c0, %c0_7] : memref<8x128xf32, #tpu.memory_space<vmem>>, vector<8x128xf32>
      %15 = vector.shape_cast %14 : vector<8x128xf32> to vector<1x8x128xf32>
      %cst = arith.constant dense<0.000000e+00> : vector<1xf32>
      %16 = vector.multi_reduction <add>, %15, %cst [1, 2] : vector<1x8x128xf32> to vector<1xf32>
      %17 = vector.shape_cast %16 : vector<1xf32> to vector<1x1x1xf32>
      %18 = vector.extract %17[0, 0, 0] : f32 from vector<1x1x1xf32>
      %19 = vector.broadcast %18 : f32 to vector<1x1xf32>
      %20 = vector.shape_cast %19 : vector<1x1xf32> to vector<1x1x1xf32>
      %c0_8 = arith.constant 0 : index
      %c0_9 = arith.constant 0 : index
      %c0_10 = arith.constant 0 : index
      %21 = vector.load %arg3[%c0_8, %c0_9, %c0_10] : memref<1x1x1xf32, #tpu.memory_space<vmem>>, vector<1x1x1xf32>
      tpu.vector_store %arg3[%c0_8, %c0_9, %c0_10], %20 {strides = array<i32>} : memref<1x1x1xf32, #tpu.memory_space<vmem>>, vector<1x1x1xf32>,
      %c0_11 = arith.constant 0 : index
      %c0_12 = arith.constant 0 : index
      %22 = vector.load %arg7[%c0_11, %c0_12] : memref<8x128xf32, #tpu.memory_space<vmem>>, vector<8x128xf32>
      %23 = vector.shape_cast %22 : vector<8x128xf32> to vector<1x8x128xf32>
      %cst_13 = arith.constant dense<0xFF800000> : vector<1xf32>
      %24 = vector.multi_reduction <maximumf>, %23, %cst_13 [1, 2] : vector<1x8x128xf32> to vector<1xf32>
      %25 = vector.shape_cast %24 : vector<1xf32> to vector<1x1x1xf32>
      %26 = vector.extract %25[0, 0, 0] : f32 from vector<1x1x1xf32>
      %27 = vector.broadcast %26 : f32 to vector<1x1xf32>
      %28 = vector.shape_cast %27 : vector<1x1xf32> to vector<1x1x1xf32>
      %c0_14 = arith.constant 0 : index
      %c0_15 = arith.constant 0 : index
      %c0_16 = arith.constant 0 : index
      %29 = vector.load %arg4[%c0_14, %c0_15, %c0_16] : memref<1x1x1xf32, #tpu.memory_space<vmem>>, vector<1x1x1xf32>
      tpu.vector_store %arg4[%c0_14, %c0_15, %c0_16], %28 {strides = array<i32>} : memref<1x1x1xf32, #tpu.memory_space<vmem>>, vector<1x1x1xf32>,
      %c0_17 = arith.constant 0 : index
      %c0_18 = arith.constant 0 : index
      %30 = vector.load %arg8[%c0_17, %c0_18] : memref<8x128xf32, #tpu.memory_space<vmem>>, vector<8x128xf32>
      %31 = vector.shape_cast %30 : vector<8x128xf32> to vector<1x8x128xf32>
      %cst_19 = arith.constant dense<0x7F800000> : vector<1xf32>
      %32 = vector.multi_reduction <minimumf>, %31, %cst_19 [1, 2] : vector<1x8x128xf32> to vector<1xf32>
      %33 = vector.shape_cast %32 : vector<1xf32> to vector<1x1x1xf32>
      %34 = vector.extract %33[0, 0, 0] : f32 from vector<1x1x1xf32>
      %35 = vector.broadcast %34 : f32 to vector<1x1xf32>
      %36 = vector.shape_cast %35 : vector<1x1xf32> to vector<1x1x1xf32>
      %c0_20 = arith.constant 0 : index
      %c0_21 = arith.constant 0 : index
      %c0_22 = arith.constant 0 : index
      %37 = vector.load %arg5[%c0_20, %c0_21, %c0_22] : memref<1x1x1xf32, #tpu.memory_space<vmem>>, vector<1x1x1xf32>
      tpu.vector_store %arg5[%c0_20, %c0_21, %c0_22], %36 {strides = array<i32>} : memref<1x1x1xf32, #tpu.memory_space<vmem>>, vector<1x1x1xf32>,
    } else {
    }
    return
  }
  func.func @transform_0(%arg0: i32, %arg1: i32) -> (i32, i32) {
    %c1_i32 = arith.constant 1 : i32
    %0 = arith.muli %arg0, %c1_i32 : i32
    %1 = arith.addi %0, %arg1 : i32
    %c0_i32 = arith.constant 0 : i32
    %c0_i32_0 = arith.constant 0 : i32
    return %1, %c0_i32 : i32, i32
  }
  func.func @transform_1(%arg0: i32, %arg1: i32) -> (i32, i32, i32) {
    %c0_i32 = arith.constant 0 : i32
    %c0_i32_0 = arith.constant 0 : i32
    %c0_i32_1 = arith.constant 0 : i32
    return %arg0, %c0_i32, %c0_i32_0 : i32, i32, i32
  }
  func.func @transform_2(%arg0: i32, %arg1: i32) -> (i32, i32, i32) {
    %c0_i32 = arith.constant 0 : i32
    %c0_i32_0 = arith.constant 0 : i32
    %c0_i32_1 = arith.constant 0 : i32
    return %arg0, %c0_i32, %c0_i32_0 : i32, i32, i32
  }
  func.func @transform_3(%arg0: i32, %arg1: i32) -> (i32, i32, i32) {
    %c0_i32 = arith.constant 0 : i32
    %c0_i32_0 = arith.constant 0 : i32
    %c0_i32_1 = arith.constant 0 : i32
    return %arg0, %c0_i32, %c0_i32_0 : i32, i32, i32
  }
}

</mosaic_0001>

<llo_original>
// kernel: _tensor_stats.1
$region0: #{_tensor_stats.1}
  #allocation0 [shape = 'u32[]', space=smem, size = 0x4, offset = 0x4, fixed_abs, tag = 'smem constant byte address 0x4 - core index']
  #allocation1 [shape = 'u32[144,128]{1,0:T(1,128)}', space=vmem, size = 0x12000, scoped, tag = 'internal scratch']
  #allocation2 [shape = 'f32[8,128]{1,0:T(8,128)}', space=vmem, size = 0x1000, scoped, tag = 'scratch operand']
  #allocation3 [shape = 'f32[8,128]{1,0:T(8,128)}', space=vmem, size = 0x1000, scoped, tag = 'scratch operand']
  #allocation4 [shape = 'f32[8,128]{1,0:T(8,128)}', space=vmem, size = 0x1000, scoped, tag = 'scratch operand']
  %s0 = inlined_call_operand.vmem [shape: f32[16,128], index: 0, kind: input, shape index: {}]
  %s1 = inlined_call_operand.hbm [shape: f32[1,1,1], index: 1, kind: output, shape index: {0}]
  %s2 = inlined_call_operand.hbm [shape: f32[1,1,1], index: 2, kind: output, shape index: {1}]
  %s3 = inlined_call_operand.hbm [shape: f32[1,1,1], index: 3, kind: output, shape index: {2}]
  %4 = xla_tuple %s1, %s2, %s3
  %s5 = sld [smem:[#allocation0]]
  $region46: #{_tensor_stats.1} parent=0
    _
  %s7 = ssub.s32 1, %s5
  %s8 = scalar_select 0, %s7, %s5
  $region1: #{_tensor_stats.1} parent=0
    #allocation5 [shape = 'u8[512]{0}', space=vmem, size = 0x400, scoped, tag = 'output window, operand 0, single buffered']
    #allocation6 [shape = 's32[1]{0}', space=sflag, size = 0x4, scoped, tag = 'scoped memory for _tensor_stats.1']
    #allocation7 [shape = 'u8[512]{0}', space=vmem, size = 0x400, scoped, tag = 'output window, operand 1, single buffered']
    #allocation8 [shape = 's32[1]{0}', space=sflag, size = 0x4, scoped, tag = 'scoped memory for _tensor_stats.1']
    #allocation9 [shape = 'u8[512]{0}', space=vmem, size = 0x400, scoped, tag = 'output window, operand 2, single buffered']
    %9 = vsyncpa [#allocation6], 0
    %10 = vsyncpa [#allocation8], 0
    // Predicated region
    $region2: #{_tensor_stats.1} parent=1 // pred_check
      _
    $region3: #{_tensor_stats.1} parent=1 // pred_check_branch
      %12 = sbr.rel (0) target = $region5
    $region4: #{_tensor_stats.1} parent=1 // pred_region
      %s13 = sadd.s32 0, 0
      %s14 = smul.u32 32, %s13
      %s15 = ssub.s32 2, %s14
      %s16 = smul.u32 128, %s15
      %p17 = scmp.lt.s32.totalorder %s14, 1
      %s18 = scalar_select %p17, %s14, 1
      %s19 = smul.addr %s18, 8
      %s20 = scalar_lea.vmem %s0, %s19
      %s21 = sadd.s32 0, 0
      %s22 = smul.u32 32, %s21
      %s23 = ssub.s32 2, %s22
      %s24 = smul.u32 128, %s23
    $region5: #{_tensor_stats.1} parent=1 // pred_fallthru
      _
    %s25 = sadd.s32 0, 0
    %s26 = smul.u32 32, %s25
    %s27 = ssub.s32 2, %s26
    %s28 = smul.u32 128, %s27
    %p29 = scmp.lt.s32.totalorder %s26, 1
    %s30 = scalar_select %p29, %s26, 1
    %s31 = smul.addr %s30, 8
    %s32 = scalar_lea.vmem %s0, %s31
    %s33 = sadd.s32 0, 0
    %s34 = smul.u32 32, %s33
    %s35 = ssub.s32 2, %s34
    %s36 = smul.u32 128, %s35
    %p37 = scmp.lt.s32.totalorder %s34, 1
    %s38 = scalar_select %p37, %s34, 1
    %s39 = smul.addr %s38, 8
    %s40 = scalar_lea.vmem %s0, %s39
    %s41 = sadd.s32 0, 0
    %s42 = smul.u32 32, %s41
    %s43 = ssub.s32 2, %s42
    %s44 = smul.u32 128, %s43
    %s45 = sadd.s32 0, 0
    %p46 = scmp.eq.s32.totalorder 0, 0
    // Predicated region
    $region6: #{_tensor_stats.1} parent=1 // pred_check
      %p47 = pneg %p46
    $region7: #{_tensor_stats.1} parent=1 // pred_check_branch
      %49 = sbr.rel (%p47) target = $region9
    $region8: #{_tensor_stats.1} parent=1 // pred_region
      %50 = vst [vmem:[#allocation2] sm:$0xff] 0.0
      %51 = vst [vmem:[#allocation3] sm:$0xff] -inf
      %52 = vst [vmem:[#allocation4] sm:$0xff] inf
    $region9: #{_tensor_stats.1} parent=1 // pred_fallthru
      _
    %p53 = scmp.lt.s32.totalorder %s45, 0
    // Predicated region
    $region10: #{_tensor_stats.1} parent=1 // pred_check
      %p54 = pneg %p53
    $region11: #{_tensor_stats.1} parent=1 // pred_check_branch
      %56 = sbr.rel (%p54) target = $region13
    $region12: #{_tensor_stats.1} parent=1 // pred_region
      %v57 = vld [vmem:[%s40] sm:$0xff]
      %v58 = vld [vmem:[%s40 + $0x8] sm:$0xff]
      %v59 = vld [vmem:[%s40 + $0x10] sm:$0xff]
      %v60 = vld [vmem:[%s40 + $0x18] sm:$0xff]
      %v61 = vld [vmem:[%s40 + $0x20] sm:$0xff]
      %v62 = vld [vmem:[%s40 + $0x28] sm:$0xff]
      %v63 = vld [vmem:[%s40 + $0x30] sm:$0xff]
      %v64 = vld [vmem:[%s40 + $0x38] sm:$0xff]
      %v65 = vld [vmem:[%s40 + $0x40] sm:$0xff]
      %v66 = vld [vmem:[%s40 + $0x48] sm:$0xff]
      %v67 = vld [vmem:[%s40 + $0x50] sm:$0xff]
      %v68 = vld [vmem:[%s40 + $0x58] sm:$0xff]
      %v69 = vld [vmem:[%s40 + $0x60] sm:$0xff]
      %v70 = vld [vmem:[%s40 + $0x68] sm:$0xff]
      %v71 = vld [vmem:[%s40 + $0x70] sm:$0xff]
      %v72 = vld [vmem:[%s40 + $0x78] sm:$0xff]
      %v73 = vld [vmem:[%s40 + $0x80] sm:$0xff]
      %v74 = vld [vmem:[%s40 + $0x88] sm:$0xff]
      %v75 = vld [vmem:[%s40 + $0x90] sm:$0xff]
      %v76 = vld [vmem:[%s40 + $0x98] sm:$0xff]
      %v77 = vld [vmem:[%s40 + $0xa0] sm:$0xff]
      %v78 = vld [vmem:[%s40 + $0xa8] sm:$0xff]
      %v79 = vld [vmem:[%s40 + $0xb0] sm:$0xff]
      %v80 = vld [vmem:[%s40 + $0xb8] sm:$0xff]
      %v81 = vld [vmem:[%s40 + $0xc0] sm:$0xff]
      %v82 = vld [vmem:[%s40 + $0xc8] sm:$0xff]
      %v83 = vld [vmem:[%s40 + $0xd0] sm:$0xff]
      %v84 = vld [vmem:[%s40 + $0xd8] sm:$0xff]
      %v85 = vld [vmem:[%s40 + $0xe0] sm:$0xff]
      %v86 = vld [vmem:[%s40 + $0xe8] sm:$0xff]
      %v87 = vld [vmem:[%s40 + $0xf0] sm:$0xff]
      %v88 = vld [vmem:[%s40 + $0xf8] sm:$0xff]
      %v89 = vld [vmem:[#allocation2] sm:$0xff]
      %v90 = vadd.f32 %v57, %v58
      %v91 = vadd.f32 %v90, %v59
      %v92 = vadd.f32 %v91, %v60
      %v93 = vadd.f32 %v92, %v61
      %v94 = vadd.f32 %v93, %v62
      %v95 = vadd.f32 %v94, %v63
      %v96 = vadd.f32 %v95, %v64
      %v97 = vadd.f32 %v96, %v65
      %v98 = vadd.f32 %v97, %v66
      %v99 = vadd.f32 %v98, %v67
      %v100 = vadd.f32 %v99, %v68
      %v101 = vadd.f32 %v100, %v69
      %v102 = vadd.f32 %v101, %v70
      %v103 = vadd.f32 %v102, %v71
      %v104 = vadd.f32 %v103, %v72
      %v105 = vadd.f32 %v104, %v73
      %v106 = vadd.f32 %v105, %v74
      %v107 = vadd.f32 %v106, %v75
      %v108 = vadd.f32 %v107, %v76
      %v109 = vadd.f32 %v108, %v77
      %v110 = vadd.f32 %v109, %v78
      %v111 = vadd.f32 %v110, %v79
      %v112 = vadd.f32 %v111, %v80
      %v113 = vadd.f32 %v112, %v81
      %v114 = vadd.f32 %v113, %v82
      %v115 = vadd.f32 %v114, %v83
      %v116 = vadd.f32 %v115, %v84
      %v117 = vadd.f32 %v116, %v85
      %v118 = vadd.f32 %v117, %v86
      %v119 = vadd.f32 %v118, %v87
      %v120 = vadd.f32 %v119, %v88
      %v121 = vadd.f32 %v89, %v120
      %122 = vst [vmem:[#allocation2] sm:$0xff] %v121
      %v123 = vld [vmem:[#allocation3] sm:$0xff]
      %v124 = vmax.f32 %v57, %v61
      %v125 = vmax.f32 %v58, %v62
      %v126 = vmax.f32 %v59, %v63
      %v127 = vmax.f32 %v60, %v64
      %v128 = vmax.f32 %v124, %v65
      %v129 = vmax.f32 %v125, %v66
      %v130 = vmax.f32 %v126, %v67
      %v131 = vmax.f32 %v127, %v68
      %v132 = vmax.f32 %v128, %v69
      %v133 = vmax.f32 %v129, %v70
      %v134 = vmax.f32 %v130, %v71
      %v135 = vmax.f32 %v131, %v72
      %v136 = vmax.f32 %v132, %v73
      %v137 = vmax.f32 %v133, %v74
      %v138 = vmax.f32 %v134, %v75
      %v139 = vmax.f32 %v135, %v76
      %v140 = vmax.f32 %v136, %v77
      %v141 = vmax.f32 %v137, %v78
      %v142 = vmax.f32 %v138, %v79
      %v143 = vmax.f32 %v139, %v80
      %v144 = vmax.f32 %v140, %v81
      %v145 = vmax.f32 %v141, %v82
      %v146 = vmax.f32 %v142, %v83
      %v147 = vmax.f32 %v143, %v84
      %v148 = vmax.f32 %v144, %v85
      %v149 = vmax.f32 %v145, %v86
      %v150 = vmax.f32 %v146, %v87
      %v151 = vmax.f32 %v147, %v88
      %v152 = vmax.f32 %v148, %v149
      %v153 = vmax.f32 %v150, %v151
      %v154 = vmax.f32 %v152, %v153
      %v155 = vmax.f32 %v123, %v154
      %156 = vst [vmem:[#allocation3] sm:$0xff] %v155
      %v157 = vld [vmem:[#allocation4] sm:$0xff]
      %v158 = vmin.f32 %v57, %v61
      %v159 = vmin.f32 %v58, %v62
      %v160 = vmin.f32 %v59, %v63
      %v161 = vmin.f32 %v60, %v64
      %v162 = vmin.f32 %v158, %v65
      %v163 = vmin.f32 %v159, %v66
      %v164 = vmin.f32 %v160, %v67
      %v165 = vmin.f32 %v161, %v68
      %v166 = vmin.f32 %v162, %v69
      %v167 = vmin.f32 %v163, %v70
      %v168 = vmin.f32 %v164, %v71
      %v169 = vmin.f32 %v165, %v72
      %v170 = vmin.f32 %v166, %v73
      %v171 = vmin.f32 %v167, %v74
      %v172 = vmin.f32 %v168, %v75
      %v173 = vmin.f32 %v169, %v76
      %v174 = vmin.f32 %v170, %v77
      %v175 = vmin.f32 %v171, %v78
      %v176 = vmin.f32 %v172, %v79
      %v177 = vmin.f32 %v173, %v80
      %v178 = vmin.f32 %v174, %v81
      %v179 = vmin.f32 %v175, %v82
      %v180 = vmin.f32 %v176, %v83
      %v181 = vmin.f32 %v177, %v84
      %v182 = vmin.f32 %v178, %v85
      %v183 = vmin.f32 %v179, %v86
      %v184 = vmin.f32 %v180, %v87
      %v185 = vmin.f32 %v181, %v88
      %v186 = vmin.f32 %v182, %v183
      %v187 = vmin.f32 %v184, %v185
      %v188 = vmin.f32 %v186, %v187
      %v189 = vmin.f32 %v157, %v188
      %190 = vst [vmem:[#allocation4] sm:$0xff] %v189
    $region13: #{_tensor_stats.1} parent=1 // pred_fallthru
      _
    %p191 = scmp.eq.s32.totalorder %s45, 0
    // Predicated region
    $region14: #{_tensor_stats.1} parent=1 // pred_check
      %p192 = pneg %p191
    $region15: #{_tensor_stats.1} parent=1 // pred_check_branch
      %194 = sbr.rel (%p192) target = $region17
    $region16: #{_tensor_stats.1} parent=1 // pred_region
      %v195 = vld [vmem:[%s40] sm:$0xff]
      %v196 = vld [vmem:[%s40 + $0x8] sm:$0xff]
      %v197 = vld [vmem:[%s40 + $0x10] sm:$0xff]
      %v198 = vld [vmem:[%s40 + $0x18] sm:$0xff]
      %v199 = vld [vmem:[%s40 + $0x20] sm:$0xff]
      %v200 = vld [vmem:[%s40 + $0x28] sm:$0xff]
      %v201 = vld [vmem:[%s40 + $0x30] sm:$0xff]
      %v202 = vld [vmem:[%s40 + $0x38] sm:$0xff]
      %v203 = vld [vmem:[%s40 + $0x40] sm:$0xff]
      %v204 = vld [vmem:[%s40 + $0x48] sm:$0xff]
      %v205 = vld [vmem:[%s40 + $0x50] sm:$0xff]
      %v206 = vld [vmem:[%s40 + $0x58] sm:$0xff]
      %v207 = vld [vmem:[%s40 + $0x60] sm:$0xff]
      %v208 = vld [vmem:[%s40 + $0x68] sm:$0xff]
      %v209 = vld [vmem:[%s40 + $0x70] sm:$0xff]
      %v210 = vld [vmem:[%s40 + $0x78] sm:$0xff]
      %v211 = vld [vmem:[%s40 + $0x80] sm:$0xff]
      %v212 = vld [vmem:[%s40 + $0x88] sm:$0xff]
      %v213 = vld [vmem:[%s40 + $0x90] sm:$0xff]
      %v214 = vld [vmem:[%s40 + $0x98] sm:$0xff]
      %v215 = vld [vmem:[%s40 + $0xa0] sm:$0xff]
      %v216 = vld [vmem:[%s40 + $0xa8] sm:$0xff]
      %v217 = vld [vmem:[%s40 + $0xb0] sm:$0xff]
      %v218 = vld [vmem:[%s40 + $0xb8] sm:$0xff]
      %v219 = vld [vmem:[%s40 + $0xc0] sm:$0xff]
      %v220 = vld [vmem:[%s40 + $0xc8] sm:$0xff]
      %v221 = vld [vmem:[%s40 + $0xd0] sm:$0xff]
      %v222 = vld [vmem:[%s40 + $0xd8] sm:$0xff]
      %v223 = vld [vmem:[%s40 + $0xe0] sm:$0xff]
      %v224 = vld [vmem:[%s40 + $0xe8] sm:$0xff]
      %v225 = vld [vmem:[%s40 + $0xf0] sm:$0xff]
      %v226 = vld [vmem:[%s40 + $0xf8] sm:$0xff]
      %v227 = vlaneseq
      %v228 = vshrl.u32 %v227, 7
      %v229 = vadd.s32 %v228, 8
      %v230 = vadd.s32 %v228, 16
      %v231 = vadd.s32 %v228, 24
      %v232 = vadd.s32 %v228, 32
      %v233 = vadd.s32 %v228, 40
      %v234 = vadd.s32 %v228, 48
      %v235 = vadd.s32 %v228, 56
      %v236 = vadd.s32 %v228, 64
      %v237 = vadd.s32 %v228, 72
      %v238 = vadd.s32 %v228, 80
      %v239 = vadd.s32 %v228, 88
      %v240 = vadd.s32 %v228, 96
      %v241 = vadd.s32 %v228, 104
      %v242 = vadd.s32 %v228, 112
      %v243 = vadd.s32 %v228, 120
      %v244 = vadd.s32 %v228, 128
      %v245 = vadd.s32 %v228, 136
      %v246 = vadd.s32 %v228, 144
      %v247 = vadd.s32 %v228, 152
      %v248 = vadd.s32 %v228, 160
      %v249 = vadd.s32 %v228, 168
      %v250 = vadd.s32 %v228, 176
      %v251 = vadd.s32 %v228, 184
      %v252 = vadd.s32 %v228, 192
      %v253 = vadd.s32 %v228, 200
      %v254 = vadd.s32 %v228, 208
      %v255 = vadd.s32 %v228, 216
      %v256 = vadd.s32 %v228, 224
      %v257 = vadd.s32 %v228, 232
      %v258 = vadd.s32 %v228, 240
      %v259 = vadd.s32 %v228, 248
      %v260 = vstv 0
      %v261 = vadd.s32 %v228, %v260
      %v262 = vadd.s32 %v229, %v260
      %v263 = vadd.s32 %v230, %v260
      %v264 = vadd.s32 %v231, %v260
      %v265 = vadd.s32 %v232, %v260
      %v266 = vadd.s32 %v233, %v260
      %v267 = vadd.s32 %v234, %v260
      %v268 = vadd.s32 %v235, %v260
      %v269 = vadd.s32 %v236, %v260
      %v270 = vadd.s32 %v237, %v260
      %v271 = vadd.s32 %v238, %v260
      %v272 = vadd.s32 %v239, %v260
      %v273 = vadd.s32 %v240, %v260
      %v274 = vadd.s32 %v241, %v260
      %v275 = vadd.s32 %v242, %v260
      %v276 = vadd.s32 %v243, %v260
      %v277 = vadd.s32 %v244, %v260
      %v278 = vadd.s32 %v245, %v260
      %v279 = vadd.s32 %v246, %v260
      %v280 = vadd.s32 %v247, %v260
      %v281 = vadd.s32 %v248, %v260
      %v282 = vadd.s32 %v249, %v260
      %v283 = vadd.s32 %v250, %v260
      %v284 = vadd.s32 %v251, %v260
      %v285 = vadd.s32 %v252, %v260
      %v286 = vadd.s32 %v253, %v260
      %v287 = vadd.s32 %v254, %v260
      %v288 = vadd.s32 %v255, %v260
      %v289 = vadd.s32 %v256, %v260
      %v290 = vadd.s32 %v257, %v260
      %v291 = vadd.s32 %v258, %v260
      %v292 = vadd.s32 %v259, %v260
      %v293 = vlaneseq
      %v294 = vand.u32 %v293, 127
      %vm295 = vcmp.lt.s32.totalorder %v261, 16
      %vm296 = vcmp.lt.s32.totalorder %v262, 16
      %vm297 = vcmp.lt.s32.totalorder %v263, 16
      %vm298 = vcmp.lt.s32.totalorder %v264, 16
      %vm299 = vcmp.lt.s32.totalorder %v265, 16
      %vm300 = vcmp.lt.s32.totalorder %v266, 16
      %vm301 = vcmp.lt.s32.totalorder %v267, 16
      %vm302 = vcmp.lt.s32.totalorder %v268, 16
      %vm303 = vcmp.lt.s32.totalorder %v269, 16
      %vm304 = vcmp.lt.s32.totalorder %v270, 16
      %vm305 = vcmp.lt.s32.totalorder %v271, 16
      %vm306 = vcmp.lt.s32.totalorder %v272, 16
      %vm307 = vcmp.lt.s32.totalorder %v273, 16
      %vm308 = vcmp.lt.s32.totalorder %v274, 16
      %vm309 = vcmp.lt.s32.totalorder %v275, 16
      %vm310 = vcmp.lt.s32.totalorder %v276, 16
      %vm311 = vcmp.lt.s32.totalorder %v277, 16
      %vm312 = vcmp.lt.s32.totalorder %v278, 16
      %vm313 = vcmp.lt.s32.totalorder %v279, 16
      %vm314 = vcmp.lt.s32.totalorder %v280, 16
      %vm315 = vcmp.lt.s32.totalorder %v281, 16
      %vm316 = vcmp.lt.s32.totalorder %v282, 16
      %vm317 = vcmp.lt.s32.totalorder %v283, 16
      %vm318 = vcmp.lt.s32.totalorder %v284, 16
      %vm319 = vcmp.lt.s32.totalorder %v285, 16
      %vm320 = vcmp.lt.s32.totalorder %v286, 16
      %vm321 = vcmp.lt.s32.totalorder %v287, 16
      %vm322 = vcmp.lt.s32.totalorder %v288, 16
      %vm323 = vcmp.lt.s32.totalorder %v289, 16
      %vm324 = vcmp.lt.s32.totalorder %v290, 16
      %vm325 = vcmp.lt.s32.totalorder %v291, 16
      %vm326 = vcmp.lt.s32.totalorder %v292, 16
      %vm327 = vcmp.eq.s32.totalorder %v261, 16
      %vm328 = vcmp.eq.s32.totalorder %v262, 16
      %vm329 = vcmp.eq.s32.totalorder %v263, 16
      %vm330 = vcmp.eq.s32.totalorder %v264, 16
      %vm331 = vcmp.eq.s32.totalorder %v265, 16
      %vm332 = vcmp.eq.s32.totalorder %v266, 16
      %vm333 = vcmp.eq.s32.totalorder %v267, 16
      %vm334 = vcmp.eq.s32.totalorder %v268, 16
      %vm335 = vcmp.eq.s32.totalorder %v269, 16
      %vm336 = vcmp.eq.s32.totalorder %v270, 16
      %vm337 = vcmp.eq.s32.totalorder %v271, 16
      %vm338 = vcmp.eq.s32.totalorder %v272, 16
      %vm339 = vcmp.eq.s32.totalorder %v273, 16
      %vm340 = vcmp.eq.s32.totalorder %v274, 16
      %vm341 = vcmp.eq.s32.totalorder %v275, 16
      %vm342 = vcmp.eq.s32.totalorder %v276, 16
      %vm343 = vcmp.eq.s32.totalorder %v277, 16
      %vm344 = vcmp.eq.s32.totalorder %v278, 16
      %vm345 = vcmp.eq.s32.totalorder %v279, 16
      %vm346 = vcmp.eq.s32.totalorder %v280, 16
      %vm347 = vcmp.eq.s32.totalorder %v281, 16
      %vm348 = vcmp.eq.s32.totalorder %v282, 16
      %vm349 = vcmp.eq.s32.totalorder %v283, 16
      %vm350 = vcmp.eq.s32.totalorder %v284, 16
      %vm351 = vcmp.eq.s32.totalorder %v285, 16
      %vm352 = vcmp.eq.s32.totalorder %v286, 16
      %vm353 = vcmp.eq.s32.totalorder %v287, 16
      %vm354 = vcmp.eq.s32.totalorder %v288, 16
      %vm355 = vcmp.eq.s32.totalorder %v289, 16
      %vm356 = vcmp.eq.s32.totalorder %v290, 16
      %vm357 = vcmp.eq.s32.totalorder %v291, 16
      %vm358 = vcmp.eq.s32.totalorder %v292, 16
      %vm359 = vcmp.lt.s32.totalorder %v294, 0
      %vm360 = vmand %vm327, %vm359
      %vm361 = vmand %vm328, %vm359
      %vm362 = vmand %vm329, %vm359
      %vm363 = vmand %vm330, %vm359
      %vm364 = vmand %vm331, %vm359
      %vm365 = vmand %vm332, %vm359
      %vm366 = vmand %vm333, %vm359
      %vm367 = vmand %vm334, %vm359
      %vm368 = vmand %vm335, %vm359
      %vm369 = vmand %vm336, %vm359
      %vm370 = vmand %vm337, %vm359
      %vm371 = vmand %vm338, %vm359
      %vm372 = vmand %vm339, %vm359
      %vm373 = vmand %vm340, %vm359
      %vm374 = vmand %vm341, %vm359
      %vm375 = vmand %vm342, %vm359
      %vm376 = vmand %vm343, %vm359
      %vm377 = vmand %vm344, %vm359
      %vm378 = vmand %vm345, %vm359
      %vm379 = vmand %vm346, %vm359
      %vm380 = vmand %vm347, %vm359
      %vm381 = vmand %vm348, %vm359
      %vm382 = vmand %vm349, %vm359
      %vm383 = vmand %vm350, %vm359
      %vm384 = vmand %vm351, %vm359
      %vm385 = vmand %vm352, %vm359
      %vm386 = vmand %vm353, %vm359
      %vm387 = vmand %vm354, %vm359
      %vm388 = vmand %vm355, %vm359
      %vm389 = vmand %vm356, %vm359
      %vm390 = vmand %vm357, %vm359
      %vm391 = vmand %vm358, %vm359
      %vm392 = vmor %vm295, %vm360
      %vm393 = vmor %vm296, %vm361
      %vm394 = vmor %vm297, %vm362
      %vm395 = vmor %vm298, %vm363
      %vm396 = vmor %vm299, %vm364
      %vm397 = vmor %vm300, %vm365
      %vm398 = vmor %vm301, %vm366
      %vm399 = vmor %vm302, %vm367
      %vm400 = vmor %vm303, %vm368
      %vm401 = vmor %vm304, %vm369
      %vm402 = vmor %vm305, %vm370
      %vm403 = vmor %vm306, %vm371
      %vm404 = vmor %vm307, %vm372
      %vm405 = vmor %vm308, %vm373
      %vm406 = vmor %vm309, %vm374
      %vm407 = vmor %vm310, %vm375
      %vm408 = vmor %vm311, %vm376
      %vm409 = vmor %vm312, %vm377
      %vm410 = vmor %vm313, %vm378
      %vm411 = vmor %vm314, %vm379
      %vm412 = vmor %vm315, %vm380
      %vm413 = vmor %vm316, %vm381
      %vm414 = vmor %vm317, %vm382
      %vm415 = vmor %vm318, %vm383
      %vm416 = vmor %vm319, %vm384
      %vm417 = vmor %vm320, %vm385
      %vm418 = vmor %vm321, %vm386
      %vm419 = vmor %vm322, %vm387
      %vm420 = vmor %vm323, %vm388
      %vm421 = vmor %vm324, %vm389
      %vm422 = vmor %vm325, %vm390
      %vm423 = vmor %vm326, %vm391
      %v424 = vsel %vm392, %v195, 0.0
      %v425 = vsel %vm393, %v196, 0.0
      %v426 = vsel %vm394, %v197, 0.0
      %v427 = vsel %vm395, %v198, 0.0
      %v428 = vsel %vm396, %v199, 0.0
      %v429 = vsel %vm397, %v200, 0.0
      %v430 = vsel %vm398, %v201, 0.0
      %v431 = vsel %vm399, %v202, 0.0
      %v432 = vsel %vm400, %v203, 0.0
      %v433 = vsel %vm401, %v204, 0.0
      %v434 = vsel %vm402, %v205, 0.0
      %v435 = vsel %vm403, %v206, 0.0
      %v436 = vsel %vm404, %v207, 0.0
      %v437 = vsel %vm405, %v208, 0.0
      %v438 = vsel %vm406, %v209, 0.0
      %v439 = vsel %vm407, %v210, 0.0
      %v440 = vsel %vm408, %v211, 0.0
      %v441 = vsel %vm409, %v212, 0.0
      %v442 = vsel %vm410, %v213, 0.0
      %v443 = vsel %vm411, %v214, 0.0
      %v444 = vsel %vm412, %v215, 0.0
      %v445 = vsel %vm413, %v216, 0.0
      %v446 = vsel %vm414, %v217, 0.0
      %v447 = vsel %vm415, %v218, 0.0
      %v448 = vsel %vm416, %v219, 0.0
      %v449 = vsel %vm417, %v220, 0.0
      %v450 = vsel %vm418, %v221, 0.0
      %v451 = vsel %vm419, %v222, 0.0
      %v452 = vsel %vm420, %v223, 0.0
      %v453 = vsel %vm421, %v224, 0.0
      %v454 = vsel %vm422, %v225, 0.0
      %v455 = vsel %vm423, %v226, 0.0
      %v456 = vsel %vm392, %v195, -inf
      %v457 = vsel %vm393, %v196, -inf
      %v458 = vsel %vm394, %v197, -inf
      %v459 = vsel %vm395, %v198, -inf
      %v460 = vsel %vm396, %v199, -inf
      %v461 = vsel %vm397, %v200, -inf
      %v462 = vsel %vm398, %v201, -inf
      %v463 = vsel %vm399, %v202, -inf
      %v464 = vsel %vm400, %v203, -inf
      %v465 = vsel %vm401, %v204, -inf
      %v466 = vsel %vm402, %v205, -inf
      %v467 = vsel %vm403, %v206, -inf
      %v468 = vsel %vm404, %v207, -inf
      %v469 = vsel %vm405, %v208, -inf
      %v470 = vsel %vm406, %v209, -inf
      %v471 = vsel %vm407, %v210, -inf
      %v472 = vsel %vm408, %v211, -inf
      %v473 = vsel %vm409, %v212, -inf
      %v474 = vsel %vm410, %v213, -inf
      %v475 = vsel %vm411, %v214, -inf
      %v476 = vsel %vm412, %v215, -inf
      %v477 = vsel %vm413, %v216, -inf
      %v478 = vsel %vm414, %v217, -inf
      %v479 = vsel %vm415, %v218, -inf
      %v480 = vsel %vm416, %v219, -inf
      %v481 = vsel %vm417, %v220, -inf
      %v482 = vsel %vm418, %v221, -inf
      %v483 = vsel %vm419, %v222, -inf
      %v484 = vsel %vm420, %v223, -inf
      %v485 = vsel %vm421, %v224, -inf
      %v486 = vsel %vm422, %v225, -inf
      %v487 = vsel %vm423, %v226, -inf
      %v488 = vsel %vm392, %v195, inf
      %v489 = vsel %vm393, %v196, inf
      %v490 = vsel %vm394, %v197, inf
      %v491 = vsel %vm395, %v198, inf
      %v492 = vsel %vm396, %v199, inf
      %v493 = vsel %vm397, %v200, inf
      %v494 = vsel %vm398, %v201, inf
      %v495 = vsel %vm399, %v202, inf
      %v496 = vsel %vm400, %v203, inf
      %v497 = vsel %vm401, %v204, inf
      %v498 = vsel %vm402, %v205, inf
      %v499 = vsel %vm403, %v206, inf
      %v500 = vsel %vm404, %v207, inf
      %v501 = vsel %vm405, %v208, inf
      %v502 = vsel %vm406, %v209, inf
      %v503 = vsel %vm407, %v210, inf
      %v504 = vsel %vm408, %v211, inf
      %v505 = vsel %vm409, %v212, inf
      %v506 = vsel %vm410, %v213, inf
      %v507 = vsel %vm411, %v214, inf
      %v508 = vsel %vm412, %v215, inf
      %v509 = vsel %vm413, %v216, inf
      %v510 = vsel %vm414, %v217, inf
      %v511 = vsel %vm415, %v218, inf
      %v512 = vsel %vm416, %v219, inf
      %v513 = vsel %vm417, %v220, inf
      %v514 = vsel %vm418, %v221, inf
      %v515 = vsel %vm419, %v222, inf
      %v516 = vsel %vm420, %v223, inf
      %v517 = vsel %vm421, %v224, inf
      %v518 = vsel %vm422, %v225, inf
      %v519 = vsel %vm423, %v226, inf
      %v520 = vld [vmem:[#allocation2] sm:$0xff]
      %v521 = vadd.f32 %v424, %v425
      %v522 = vadd.f32 %v521, %v426
      %v523 = vadd.f32 %v522, %v427
      %v524 = vadd.f32 %v523, %v428
      %v525 = vadd.f32 %v524, %v429
      %v526 = vadd.f32 %v525, %v430
      %v527 = vadd.f32 %v526, %v431
      %v528 = vadd.f32 %v527, %v432
      %v529 = vadd.f32 %v528, %v433
      %v530 = vadd.f32 %v529, %v434
      %v531 = vadd.f32 %v530, %v435
      %v532 = vadd.f32 %v531, %v436
      %v533 = vadd.f32 %v532, %v437
      %v534 = vadd.f32 %v533, %v438
      %v535 = vadd.f32 %v534, %v439
      %v536 = vadd.f32 %v535, %v440
      %v537 = vadd.f32 %v536, %v441
      %v538 = vadd.f32 %v537, %v442
      %v539 = vadd.f32 %v538, %v443
      %v540 = vadd.f32 %v539, %v444
      %v541 = vadd.f32 %v540, %v445
      %v542 = vadd.f32 %v541, %v446
      %v543 = vadd.f32 %v542, %v447
      %v544 = vadd.f32 %v543, %v448
      %v545 = vadd.f32 %v544, %v449
      %v546 = vadd.f32 %v545, %v450
      %v547 = vadd.f32 %v546, %v451
      %v548 = vadd.f32 %v547, %v452
      %v549 = vadd.f32 %v548, %v453
      %v550 = vadd.f32 %v549, %v454
      %v551 = vadd.f32 %v550, %v455
      %v552 = vadd.f32 %v520, %v551
      %553 = vst [vmem:[#allocation2] sm:$0xff] %v552
      %v554 = vld [vmem:[#allocation3] sm:$0xff]
      %v555 = vmax.f32 %v456, %v460
      %v556 = vmax.f32 %v457, %v461
      %v557 = vmax.f32 %v458, %v462
      %v558 = vmax.f32 %v459, %v463
      %v559 = vmax.f32 %v555, %v464
      %v560 = vmax.f32 %v556, %v465
      %v561 = vmax.f32 %v557, %v466
      %v562 = vmax.f32 %v558, %v467
      %v563 = vmax.f32 %v559, %v468
      %v564 = vmax.f32 %v560, %v469
      %v565 = vmax.f32 %v561, %v470
      %v566 = vmax.f32 %v562, %v471
      %v567 = vmax.f32 %v563, %v472
      %v568 = vmax.f32 %v564, %v473
      %v569 = vmax.f32 %v565, %v474
      %v570 = vmax.f32 %v566, %v475
      %v571 = vmax.f32 %v567, %v476
      %v572 = vmax.f32 %v568, %v477
      %v573 = vmax.f32 %v569, %v478
      %v574 = vmax.f32 %v570, %v479
      %v575 = vmax.f32 %v571, %v480
      %v576 = vmax.f32 %v572, %v481
      %v577 = vmax.f32 %v573, %v482
      %v578 = vmax.f32 %v574, %v483
      %v579 = vmax.f32 %v575, %v484
      %v580 = vmax.f32 %v576, %v485
      %v581 = vmax.f32 %v577, %v486
      %v582 = vmax.f32 %v578, %v487
      %v583 = vmax.f32 %v579, %v580
      %v584 = vmax.f32 %v581, %v582
      %v585 = vmax.f32 %v583, %v584
      %v586 = vmax.f32 %v554, %v585
      %587 = vst [vmem:[#allocation3] sm:$0xff] %v586
      %v588 = vld [vmem:[#allocation4] sm:$0xff]
      %v589 = vmin.f32 %v488, %v492
      %v590 = vmin.f32 %v489, %v493
      %v591 = vmin.f32 %v490, %v494
      %v592 = vmin.f32 %v491, %v495
      %v593 = vmin.f32 %v589, %v496
      %v594 = vmin.f32 %v590, %v497
      %v595 = vmin.f32 %v591, %v498
      %v596 = vmin.f32 %v592, %v499
      %v597 = vmin.f32 %v593, %v500
      %v598 = vmin.f32 %v594, %v501
      %v599 = vmin.f32 %v595, %v502
      %v600 = vmin.f32 %v596, %v503
      %v601 = vmin.f32 %v597, %v504
      %v602 = vmin.f32 %v598, %v505
      %v603 = vmin.f32 %v599, %v506
      %v604 = vmin.f32 %v600, %v507
      %v605 = vmin.f32 %v601, %v508
      %v606 = vmin.f32 %v602, %v509
      %v607 = vmin.f32 %v603, %v510
      %v608 = vmin.f32 %v604, %v511
      %v609 = vmin.f32 %v605, %v512
      %v610 = vmin.f32 %v606, %v513
      %v611 = vmin.f32 %v607, %v514
      %v612 = vmin.f32 %v608, %v515
      %v613 = vmin.f32 %v609, %v516
      %v614 = vmin.f32 %v610, %v517
      %v615 = vmin.f32 %v611, %v518
      %v616 = vmin.f32 %v612, %v519
      %v617 = vmin.f32 %v613, %v614
      %v618 = vmin.f32 %v615, %v616
      %v619 = vmin.f32 %v617, %v618
      %v620 = vmin.f32 %v588, %v619
      %621 = vst [vmem:[#allocation4] sm:$0xff] %v620
    $region17: #{_tensor_stats.1} parent=1 // pred_fallthru
      _
    // Predicated region
    $region18: #{_tensor_stats.1} parent=1 // pred_check
      %p622 = pneg %p46
    $region19: #{_tensor_stats.1} parent=1 // pred_check_branch
      %624 = sbr.rel (%p622) target = $region21
    $region20: #{_tensor_stats.1} parent=1 // pred_region
      %v625 = vld [vmem:[#allocation2] sm:$0xff]
      %626 = vadd.xlane.f32.xlu0 %v625
      %v627 = vpop.xlane.xlu0 %626
      %v628 = vrot.slane %v627, 4
      %v629 = vadd.f32 %v627, %v628
      %v630 = vrot.slane %v629, 2
      %v631 = vadd.f32 %v629, %v630
      %v632 = vrot.slane %v631, 1
      %v633 = vadd.f32 %v631, %v632
      %s634 = vtos %v633
      %v635 = vstv %s634
      %vm636 = vcmask 0
      %637 = vst.msk [vmem:[#allocation5] sm:$0x1] %vm636, %v635
      %v638 = vld [vmem:[#allocation3] sm:$0xff]
      %639 = vmax.xlane.f32.xlu0 %v638
      %v640 = vpop.xlane.xlu0 %639
      %v641 = vrot.slane %v640, 4
      %v642 = vmax.f32 %v640, %v641
      %v643 = vrot.slane %v642, 2
      %v644 = vmax.f32 %v642, %v643
      %v645 = vrot.slane %v644, 1
      %v646 = vmax.f32 %v644, %v645
      %s647 = vtos %v646
      %v648 = vstv %s647
      %649 = vst.msk [vmem:[#allocation7] sm:$0x1] %vm636, %v648
      %v650 = vld [vmem:[#allocation4] sm:$0xff]
      %651 = vmin.xlane.f32.xlu0 %v650
      %v652 = vpop.xlane.xlu0 %651
      %v653 = vrot.slane %v652, 4
      %v654 = vmin.f32 %v652, %v653
      %v655 = vrot.slane %v654, 2
      %v656 = vmin.f32 %v654, %v655
      %v657 = vrot.slane %v656, 1
      %v658 = vmin.f32 %v656, %v657
      %s659 = vtos %v658
      %v660 = vstv %s659
      %661 = vst.msk [vmem:[#allocation9] sm:$0x1] %vm636, %v660
    $region21: #{_tensor_stats.1} parent=1 // pred_fallthru
      _
    // Predicated region
    $region22: #{_tensor_stats.1} parent=1 // pred_check
      _
    $region23: #{_tensor_stats.1} parent=1 // pred_check_branch
      %663 = sbr.rel (0) target = $region25
    $region24: #{_tensor_stats.1} parent=1 // pred_region
      %s665 = ssub.s32 16, 16
      %666 = vsyncadd [#allocation6], %s665
      %s668 = sshll.u32 [#allocation5], 4
      %s669 = int_to_ptr.vmem [resolvable:$true] %s668
      %671 = dma.vmem_to_hbm [thread:$0]  %s669, 16, %s1, [#allocation6]
    $region25: #{_tensor_stats.1} parent=1 // pred_fallthru
      _
    // Predicated region
    $region26: #{_tensor_stats.1} parent=1 // pred_check
      _
    $region27: #{_tensor_stats.1} parent=1 // pred_check_branch
      %673 = sbr.rel (0) target = $region29
    $region28: #{_tensor_stats.1} parent=1 // pred_region
      %s675 = ssub.s32 16, 16
      %676 = vsyncadd [#allocation8], %s675
      %s678 = sshll.u32 [#allocation7], 4
      %s679 = int_to_ptr.vmem [resolvable:$true] %s678
      %681 = dma.vmem_to_hbm [thread:$0]  %s679, 16, %s2, [#allocation8]
    $region29: #{_tensor_stats.1} parent=1 // pred_fallthru
      _
    // Predicated region
    $region30: #{_tensor_stats.1} parent=1 // pred_check
      _
    $region31: #{_tensor_stats.1} parent=1 // pred_check_branch
      %683 = sbr.rel (0) target = $region33
    $region32: #{_tensor_stats.1} parent=1 // pred_region
      %s685 = ssub.s32 16, 16
      %686 = vsyncadd [#allocation8], %s685
      %s688 = sshll.u32 [#allocation9], 4
      %s689 = int_to_ptr.vmem [resolvable:$true] %s688
      %691 = dma.vmem_to_hbm [thread:$0]  %s689, 16, %s3, [#allocation8]
    $region33: #{_tensor_stats.1} parent=1 // pred_fallthru
      _
    // Predicated region
    $region34: #{_tensor_stats.1} parent=1 // pred_check
      _
    $region35: #{_tensor_stats.1} parent=1 // pred_check_branch
      %693 = sbr.rel (0) target = $region37
    $region36: #{_tensor_stats.1} parent=1 // pred_region
      %694 = dma.done [#allocation6], 16
    $region37: #{_tensor_stats.1} parent=1 // pred_fallthru
      _
    // Predicated region
    $region38: #{_tensor_stats.1} parent=1 // pred_check
      _
    $region39: #{_tensor_stats.1} parent=1 // pred_check_branch
      %696 = sbr.rel (0) target = $region41
    $region40: #{_tensor_stats.1} parent=1 // pred_region
      %697 = dma.done [#allocation8], 16
    $region41: #{_tensor_stats.1} parent=1 // pred_fallthru
      _
    // Predicated region
    $region42: #{_tensor_stats.1} parent=1 // pred_check
      _
    $region43: #{_tensor_stats.1} parent=1 // pred_check_branch
      %699 = sbr.rel (0) target = $region45
    $region44: #{_tensor_stats.1} parent=1 // pred_region
      %700 = dma.done [#allocation8], 16
    $region45: #{_tensor_stats.1} parent=1 // pred_fallthru
      _
    %701 = vsyncpa [#allocation6], 1
    %702 = vsyncpa [#allocation8], 1

</llo_original>
